<compile_context>
chip_gen: v5e
topology: v5e:2x2
jax: 0.10.0
libtpu: 0.0.40
codegen_flags: <defaults>
</compile_context>

<pallas_src>
import jax
import jax.numpy as jnp
from jax.experimental import pallas as pl
from jax.experimental.pallas import tpu as pltpu


def _round_up(x, m):
    return ((x + m - 1) // m) * m


def _vmem_block_bytes(rows, cols, dtype):
    """Bytes a (rows, cols) block occupies in VMEM, including (8,128) tile padding."""
    itemsize = jnp.dtype(dtype).itemsize
    sublane = 8 if itemsize >= 4 else 8 * (4 // itemsize)   # 8 f32 / 16 bf16 / 32 i8
    return _round_up(max(rows, 1), sublane) * _round_up(max(cols, 1), 128) * itemsize


def _mlp_kernel(x_ref, w1_ref, b1_ref, w2_ref, b2_ref, o_ref):
    # Cast x on the VPU *inside* the kernel (under the DMA shadow) so the HBM
    # stream stays at the input's native width -- no wrapper-side convert pass.
    x = x_ref[...].astype(w1_ref.dtype)                       # (TILE_N, in)
    h = jnp.dot(x, w1_ref[...],
                preferred_element_type=jnp.float32)           # (TILE_N, 32)  MXU, f32 acc
    h = jnp.maximum(h + b1_ref[...], 0.0)                     # bias + ReLU in f32 (VPU)
    # Second GEMM is tiny ((TILE_N,32)x(32,out)): keep it fully in f32 -- no
    # extra rounding step, negligible MXU cost.
    y = jnp.dot(h, w2_ref[...],
                preferred_element_type=jnp.float32)           # (TILE_N, out)
    o_ref[...] = (y + b2_ref[...]).astype(o_ref.dtype)


def neural_net_forward(x, w1, b1, w2, b2, *,
                       compute_dtype=jnp.bfloat16, tile_n=4096):
    """Forward pass of NeuralNet: relu(x @ w1 + b1) @ w2 + b2.

    x : (N, in_size); w1 : (in_size, 32); b1 : (32,); w2 : (32, out_size); b2 : (out_size,)
    Weights are stored pre-transposed (fan_in, fan_out), matching Linear.weight.T.
    """
    n, in_size = x.shape
    hidden = w1.shape[1]
    out_size = w2.shape[1]
    out_dtype = x.dtype

    # --- dtype plumbing -----------------------------------------------------
    # Weights/biases are tiny and VMEM-resident: cast once in the wrapper.
    # x stays in its native dtype; the kernel casts it right before the first
    # dot.  w2/b1/b2 stay f32 so the whole epilogue is f32.
    w1c = w1.astype(compute_dtype)
    w2c = w2.astype(jnp.float32)
    b1_2d = b1.astype(jnp.float32).reshape(1, hidden)
    b2_2d = b2.astype(jnp.float32).reshape(1, out_size)

    # --- tile selection -----------------------------------------------------
    # Multiple of 8 (32 aligns bf16 sublane packing), clamped to the batch,
    # budgeted against scoped VMEM *with* (8,128) padding accounted for, and
    # forced to leave >= 2 grid steps for large N (v7x has 2 TensorCores).
    tile_n = max(8, min(int(tile_n), _round_up(n, 8)))
    tile_n = _round_up(tile_n, 8)

    vmem_budget = 24 * 1024 * 1024   # headroom inside the 32 MiB scoped limit (v7x-safe)

    def tile_vmem_bytes(t):
        x_blk = 2 * _vmem_block_bytes(t, in_size, x.dtype)        # double-buffered input
        o_blk = 2 * _vmem_block_bytes(t, out_size, out_dtype)     # double-buffered output
        w_blk = 2 * (_vmem_block_bytes(in_size, hidden, compute_dtype)
                     + _vmem_block_bytes(hidden, out_size, jnp.float32))
        b_blk = 2 * (_vmem_block_bytes(1, hidden, jnp.float32)
                     + _vmem_block_bytes(1, out_size, jnp.float32))
        return x_blk + o_blk + w_blk + b_blk

    while tile_n > 8 and tile_vmem_bytes(tile_n) > vmem_budget:
        tile_n = _round_up(max(8, tile_n // 2), 8)

    if n >= 1024:
        # Guarantee >= 2 grid steps so both v7x TCs get work (no-op on v5e/v6e).
        tile_n = min(tile_n, _round_up(pl.cdiv(n, 2), 8))

    grid = (pl.cdiv(n, tile_n),)

    cost = pl.CostEstimate(
        flops=2 * n * (in_size * hidden + hidden * out_size),
        transcendentals=0,
        bytes_accessed=(n * in_size * jnp.dtype(x.dtype).itemsize          # x read (native)
                        + in_size * hidden * jnp.dtype(compute_dtype).itemsize
                        + (hidden * out_size + hidden + out_size) * 4       # f32 w2 + biases
                        + n * out_size * jnp.dtype(out_dtype).itemsize),    # y write
    )

    return pl.pallas_call(
        _mlp_kernel,
        out_shape=jax.ShapeDtypeStruct((n, out_size), out_dtype),
        grid=grid,
        in_specs=[
            # batch-tiled activations (ragged tail handled by Pallas masking)
            pl.BlockSpec((tile_n, in_size), lambda i: (i, 0)),
            # weights / biases: constant index_map -> fetched once, VMEM-resident
            pl.BlockSpec((in_size, hidden), lambda i: (0, 0)),
            pl.BlockSpec((1, hidden), lambda i: (0, 0)),
            pl.BlockSpec((hidden, out_size), lambda i: (0, 0)),
            pl.BlockSpec((1, out_size), lambda i: (0, 0)),
        ],
        out_specs=pl.BlockSpec((tile_n, out_size), lambda i: (i, 0)),
        compiler_params=pltpu.CompilerParams(
            dimension_semantics=("parallel",),      # shard batch steps across TCs on v7x
            vmem_limit_bytes=32 * 1024 * 1024,
        ),
        cost_estimate=cost,
    )(x, w1c, b1_2d, w2c, b2_2d)


def init_params(key, in_size, hidden, out_size):
    """PyTorch nn.Linear-style init (uniform +-1/sqrt(fan_in)); weights stored (fan_in, fan_out)."""
    k1, k2, k3, k4 = jax.random.split(key, 4)
    bound1 = 1.0 / jnp.sqrt(in_size)
    bound2 = 1.0 / jnp.sqrt(hidden)
    w1 = jax.random.uniform(k1, (in_size, hidden), jnp.float32, -bound1, bound1)
    b1 = jax.random.uniform(k2, (hidden,), jnp.float32, -bound1, bound1)
    w2 = jax.random.uniform(k3, (hidden, out_size), jnp.float32, -bound2, bound2)
    b2 = jax.random.uniform(k4, (out_size,), jnp.float32, -bound2, bound2)
    return w1, b1, w2, b2


if __name__ == "__main__":
    key = jax.random.PRNGKey(0)
    kx, kp = jax.random.split(key)

    N, IN_SIZE, HIDDEN, OUT_SIZE = 40, 64, 32, 4

    x = jax.random.normal(kx, (N, IN_SIZE), dtype=jnp.float32)
    w1, b1, w2, b2 = init_params(kp, IN_SIZE, HIDDEN, OUT_SIZE)

    # Pure-JAX reference (f32).
    y_ref = jnp.maximum(x @ w1 + b1, 0.0) @ w2 + b2

    # 1) f32 compute path with a small tile -> exercises the multi-step grid
    #    and the ragged tail (40 rows, tile 16 -> 3 blocks, last one masked).
    y_f32 = neural_net_forward(x, w1, b1, w2, b2,
                               compute_dtype=jnp.float32, tile_n=16)
    jax.block_until_ready(y_f32)
    assert y_f32.shape == (N, OUT_SIZE)
    assert jnp.allclose(y_f32, y_ref, atol=1e-5, rtol=1e-5)

    # 2) default bf16 compute path (in-kernel cast, f32 accumulation + f32
    #    second GEMM) with the default large tile (clamped to the batch).
    y_bf16 = neural_net_forward(x, w1, b1, w2, b2)
    jax.block_until_ready(y_bf16)
    assert y_bf16.shape == (N, OUT_SIZE)
    assert jnp.allclose(y_bf16, y_ref, atol=5e-2, rtol=5e-2)

    print("KERNEL_OK")
</pallas_src>

<mosaic_0001>
module attributes {stable_mosaic.version = 11 : i64} {
  func.func @_mlp_kernel(%arg0: i32, %arg1: memref<16x64xf32, #tpu.memory_space<vmem>>, %arg2: memref<64x32xf32, #tpu.memory_space<vmem>>, %arg3: memref<1x32xf32, #tpu.memory_space<vmem>>, %arg4: memref<32x4xf32, #tpu.memory_space<vmem>>, %arg5: memref<1x4xf32, #tpu.memory_space<vmem>>, %arg6: memref<16x4xf32, #tpu.memory_space<vmem>>) attributes {dimension_semantics = [#tpu.dimension_semantics<parallel>], iteration_bounds = array<i64: 3>, scalar_prefetch = 0 : i64, scratch_operands = 0 : i64, tpu.core_type = #tpu.core_type<tc>, window_params = [{transform_indices = @transform_0, window_bounds = array<i64: 16, 64>}, {pipeline_mode = #tpu.pipeline_mode<synchronous>, transform_indices = @transform_1, window_bounds = array<i64: 64, 32>}, {pipeline_mode = #tpu.pipeline_mode<synchronous>, transform_indices = @transform_2, window_bounds = array<i64: 1, 32>}, {pipeline_mode = #tpu.pipeline_mode<synchronous>, transform_indices = @transform_3, window_bounds = array<i64: 32, 4>}, {pipeline_mode = #tpu.pipeline_mode<synchronous>, transform_indices = @transform_4, window_bounds = array<i64: 1, 4>}, {transform_indices = @transform_5, window_bounds = array<i64: 16, 4>}]} {
    %c0 = arith.constant 0 : index
    %c0_0 = arith.constant 0 : index
    %0 = vector.load %arg1[%c0, %c0_0] : memref<16x64xf32, #tpu.memory_space<vmem>>, vector<16x64xf32>
    %c0_1 = arith.constant 0 : index
    %c0_2 = arith.constant 0 : index
    %1 = vector.load %arg2[%c0_1, %c0_2] : memref<64x32xf32, #tpu.memory_space<vmem>>, vector<64x32xf32>
    %cst = arith.constant dense<0.000000e+00> : vector<16x32xf32>
    %2 = tpu.matmul %0, %1, %cst {dimension_numbers = #tpu.dot_dimension_numbers<[1], [0], [0], [1], [0, 0, 1, 1], [], []>} : vector<16x64xf32>, vector<64x32xf32>, vector<16x32xf32> -> vector<16x32xf32>
    %c0_3 = arith.constant 0 : index
    %c0_4 = arith.constant 0 : index
    %3 = vector.load %arg3[%c0_3, %c0_4] : memref<1x32xf32, #tpu.memory_space<vmem>>, vector<1x32xf32>
    %4 = vector.broadcast %3 : vector<1x32xf32> to vector<16x32xf32>
    %5 = arith.addf %2, %4 : vector<16x32xf32>
    %cst_5 = arith.constant 0.000000e+00 : f32
    %6 = vector.broadcast %cst_5 : f32 to vector<16x32xf32>
    %7 = arith.maximumf %5, %6 : vector<16x32xf32>
    %c0_6 = arith.constant 0 : index
    %c0_7 = arith.constant 0 : index
    %8 = vector.load %arg4[%c0_6, %c0_7] : memref<32x4xf32, #tpu.memory_space<vmem>>, vector<32x4xf32>
    %cst_8 = arith.constant dense<0.000000e+00> : vector<16x4xf32>
    %9 = tpu.matmul %7, %8, %cst_8 {dimension_numbers = #tpu.dot_dimension_numbers<[1], [0], [0], [1], [0, 0, 1, 1], [], []>} : vector<16x32xf32>, vector<32x4xf32>, vector<16x4xf32> -> vector<16x4xf32>
    %c0_9 = arith.constant 0 : index
    %c0_10 = arith.constant 0 : index
    %10 = vector.load %arg5[%c0_9, %c0_10] : memref<1x4xf32, #tpu.memory_space<vmem>>, vector<1x4xf32>
    %11 = vector.broadcast %10 : vector<1x4xf32> to vector<16x4xf32>
    %12 = arith.addf %9, %11 : vector<16x4xf32>
    %c0_11 = arith.constant 0 : index
    %c0_12 = arith.constant 0 : index
    %13 = vector.load %arg6[%c0_11, %c0_12] : memref<16x4xf32, #tpu.memory_space<vmem>>, vector<16x4xf32>
    tpu.vector_store %arg6[%c0_11, %c0_12], %12 {strides = array<i32>} : memref<16x4xf32, #tpu.memory_space<vmem>>, vector<16x4xf32>,
    return
  }
  func.func @transform_0(%arg0: i32) -> (i32, i32) {
    %c0_i32 = arith.constant 0 : i32
    %c0_i32_0 = arith.constant 0 : i32
    return %arg0, %c0_i32 : i32, i32
  }
  func.func @transform_1(%arg0: i32) -> (i32, i32) {
    %c0_i32 = arith.constant 0 : i32
    %c0_i32_0 = arith.constant 0 : i32
    %c0_i32_1 = arith.constant 0 : i32
    return %c0_i32, %c0_i32_0 : i32, i32
  }
  func.func @transform_2(%arg0: i32) -> (i32, i32) {
    %c0_i32 = arith.constant 0 : i32
    %c0_i32_0 = arith.constant 0 : i32
    %c0_i32_1 = arith.constant 0 : i32
    return %c0_i32, %c0_i32_0 : i32, i32
  }
  func.func @transform_3(%arg0: i32) -> (i32, i32) {
    %c0_i32 = arith.constant 0 : i32
    %c0_i32_0 = arith.constant 0 : i32
    %c0_i32_1 = arith.constant 0 : i32
    return %c0_i32, %c0_i32_0 : i32, i32
  }
  func.func @transform_4(%arg0: i32) -> (i32, i32) {
    %c0_i32 = arith.constant 0 : i32
    %c0_i32_0 = arith.constant 0 : i32
    %c0_i32_1 = arith.constant 0 : i32
    return %c0_i32, %c0_i32_0 : i32, i32
  }
  func.func @transform_5(%arg0: i32) -> (i32, i32) {
    %c0_i32 = arith.constant 0 : i32
    %c0_i32_0 = arith.constant 0 : i32
    return %arg0, %c0_i32 : i32, i32
  }
}

</mosaic_0001>

<llo_original>
// kernel: tpu_custom_call.1
$region0: #{tpu_custom_call.1}
  #allocation0 [shape = 'u32[]', space=smem, size = 0x4, offset = 0x4, fixed_abs, tag = 'smem constant byte address 0x4 - core index']
  #allocation1 [shape = 'u32[72,128]{1,0:T(1,128)}', space=vmem, size = 0x9000, scoped, tag = 'internal scratch']
  %s0 = inlined_call_operand.vmem [shape: f32[40,64], index: 0, kind: input, shape index: {}]
  %s1 = inlined_call_operand.vmem [shape: f32[64,32], index: 1, kind: input, shape index: {}]
  %s2 = inlined_call_operand.vmem [shape: f32[1,32], index: 2, kind: input, shape index: {}]
  %s3 = inlined_call_operand.vmem [shape: f32[32,4], index: 3, kind: input, shape index: {}]
  %s4 = inlined_call_operand.vmem [shape: f32[1,4], index: 4, kind: input, shape index: {}]
  %s5 = inlined_call_operand.vmem [shape: f32[40,4], index: 5, kind: output, shape index: {}]
  %s6 = sld [smem:[#allocation0]]
  $region101: #{tpu_custom_call.1} parent=0
    _
  %s8 = ssub.s32 1, %s6
  %s9 = scalar_select 0, %s8, %s6
  $region1: #{tpu_custom_call.1} parent=0
    #allocation2 [shape = 'u8[16384]{0}', space=vmem, size = 0x4000, scoped, tag = 'output window, operand 0']
    loop: start=0, step=1, limit=5
    $region2: #{tpu_custom_call.1} parent=1 // loop_pre_header
      _
    $region3: #{tpu_custom_call.1} parent=1 // loop_header
      %s11 = sphi 0, %s15
      %p12 = scmp.ge.s32.totalorder %s11, 5
      %s21 = sphi 0, %s23
      %s24 = sphi 0, %s21
      %s25 = sphi 0, %s24
      %s41 = sphi 0, %s25
      %s45 = sphi 0, %s45
      %s47 = sphi 0, %s45
      %s48 = sphi 0, %s47
      %s62 = sphi 0, %s48
      %s66 = sphi 0, %s66
      %s68 = sphi 0, %s66
      %s69 = sphi 0, %s68
      %s83 = sphi 0, %s69
      %s87 = sphi 0, %s87
      %s89 = sphi 0, %s87
      %s90 = sphi 0, %s89
      %s104 = sphi 0, %s90
      %s108 = sphi 0, %s108
      %s110 = sphi 0, %s108
      %s111 = sphi 0, %s110
      %s125 = sphi 0, %s111
      %s131 = sphi 0, %s133
      %s134 = sphi 0, %s131
      %s135 = sphi 0, %s134
      %s151 = sphi 0, %s135
    $region4: #{tpu_custom_call.1} parent=1 // loop_header_branch
      %14 = sbr.rel (%p12) target = $region8
    $region5: #{tpu_custom_call.1} parent=1 // loop_body
      %s16 = ssub.s32 %s11, 1
      %s17 = ssub.s32 %s11, 2
      %s18 = sadd.s32 %s11, 1
      %s19 = ssub.s32 %s11, %s18
      %p20 = scmp.eq.s32.totalorder %s19, 0
      %s22 = sadd.s32 %s21, 1
      %s23 = scalar_select %p20, %s21, %s22
      %p26 = pneg %p20
      %p27 = scmp.eq.s32.totalorder %s11, 2
      %p28 = por %p26, %p27
      %p29 = scmp.ne.s32.totalorder %s21, %s24
      %p30 = scmp.eq.s32.totalorder %s11, 0
      %p31 = por %p29, %p30
      %p32 = scmp.ne.s32.totalorder %s21, %s24
      %p33 = scmp.eq.s32.totalorder %s16, 2
      %p34 = por %p32, %p33
      %p35 = scmp.ne.s32.totalorder %s24, %s25
      %p36 = scmp.eq.s32.totalorder %s16, 0
      %p37 = por %p35, %p36
      %p38 = scmp.ne.s32.totalorder %s24, %s25
      %p39 = scmp.eq.s32.totalorder %s17, 2
      %p40 = por %p38, %p39
      %p42 = scmp.ne.s32.totalorder %s25, %s41
      %p43 = scmp.eq.s32.totalorder %s17, 0
      %p44 = por %p42, %p43
      %s46 = sadd.s32 %s45, 1
      %p49 = scmp.eq.s32.totalorder %s11, 2
      %p50 = scmp.ne.s32.totalorder %s45, %s47
      %p51 = scmp.eq.s32.totalorder %s11, 0
      %p52 = por %p50, %p51
      %p53 = scmp.ne.s32.totalorder %s45, %s47
      %p54 = scmp.eq.s32.totalorder %s16, 2
      %p55 = por %p53, %p54
      %p56 = scmp.ne.s32.totalorder %s47, %s48
      %p57 = scmp.eq.s32.totalorder %s16, 0
      %p58 = por %p56, %p57
      %p59 = scmp.ne.s32.totalorder %s47, %s48
      %p60 = scmp.eq.s32.totalorder %s17, 2
      %p61 = por %p59, %p60
      %p63 = scmp.ne.s32.totalorder %s48, %s62
      %p64 = scmp.eq.s32.totalorder %s17, 0
      %p65 = por %p63, %p64
      %s67 = sadd.s32 %s66, 1
      %p70 = scmp.eq.s32.totalorder %s11, 2
      %p71 = scmp.ne.s32.totalorder %s66, %s68
      %p72 = scmp.eq.s32.totalorder %s11, 0
      %p73 = por %p71, %p72
      %p74 = scmp.ne.s32.totalorder %s66, %s68
      %p75 = scmp.eq.s32.totalorder %s16, 2
      %p76 = por %p74, %p75
      %p77 = scmp.ne.s32.totalorder %s68, %s69
      %p78 = scmp.eq.s32.totalorder %s16, 0
      %p79 = por %p77, %p78
      %p80 = scmp.ne.s32.totalorder %s68, %s69
      %p81 = scmp.eq.s32.totalorder %s17, 2
      %p82 = por %p80, %p81
      %p84 = scmp.ne.s32.totalorder %s69, %s83
      %p85 = scmp.eq.s32.totalorder %s17, 0
      %p86 = por %p84, %p85
      %s88 = sadd.s32 %s87, 1
      %p91 = scmp.eq.s32.totalorder %s11, 2
      %p92 = scmp.ne.s32.totalorder %s87, %s89
      %p93 = scmp.eq.s32.totalorder %s11, 0
      %p94 = por %p92, %p93
      %p95 = scmp.ne.s32.totalorder %s87, %s89
      %p96 = scmp.eq.s32.totalorder %s16, 2
      %p97 = por %p95, %p96
      %p98 = scmp.ne.s32.totalorder %s89, %s90
      %p99 = scmp.eq.s32.totalorder %s16, 0
      %p100 = por %p98, %p99
      %p101 = scmp.ne.s32.totalorder %s89, %s90
      %p102 = scmp.eq.s32.totalorder %s17, 2
      %p103 = por %p101, %p102
      %p105 = scmp.ne.s32.totalorder %s90, %s104
      %p106 = scmp.eq.s32.totalorder %s17, 0
      %p107 = por %p105, %p106
      %s109 = sadd.s32 %s108, 1
      %p112 = scmp.eq.s32.totalorder %s11, 2
      %p113 = scmp.ne.s32.totalorder %s108, %s110
      %p114 = scmp.eq.s32.totalorder %s11, 0
      %p115 = por %p113, %p114
      %p116 = scmp.ne.s32.totalorder %s108, %s110
      %p117 = scmp.eq.s32.totalorder %s16, 2
      %p118 = por %p116, %p117
      %p119 = scmp.ne.s32.totalorder %s110, %s111
      %p120 = scmp.eq.s32.totalorder %s16, 0
      %p121 = por %p119, %p120
      %p122 = scmp.ne.s32.totalorder %s110, %s111
      %p123 = scmp.eq.s32.totalorder %s17, 2
      %p124 = por %p122, %p123
      %p126 = scmp.ne.s32.totalorder %s111, %s125
      %p127 = scmp.eq.s32.totalorder %s17, 0
      %p128 = por %p126, %p127
      %s129 = ssub.s32 %s11, %s18
      %p130 = scmp.eq.s32.totalorder %s129, 0
      %s132 = sadd.s32 %s131, 1
      %s133 = scalar_select %p130, %s131, %s132
      %p136 = pneg %p130
      %p137 = scmp.eq.s32.totalorder %s11, 2
      %p138 = por %p136, %p137
      %p139 = scmp.ne.s32.totalorder %s131, %s134
      %p140 = scmp.eq.s32.totalorder %s11, 0
      %p141 = por %p139, %p140
      %p142 = scmp.ne.s32.totalorder %s131, %s134
      %p143 = scmp.eq.s32.totalorder %s16, 2
      %p144 = por %p142, %p143
      %p145 = scmp.ne.s32.totalorder %s134, %s135
      %p146 = scmp.eq.s32.totalorder %s16, 0
      %p147 = por %p145, %p146
      %p148 = scmp.ne.s32.totalorder %s134, %s135
      %p149 = scmp.eq.s32.totalorder %s17, 2
      %p150 = por %p148, %p149
      %p152 = scmp.ne.s32.totalorder %s135, %s151
      %p153 = scmp.eq.s32.totalorder %s17, 0
      %p154 = por %p152, %p153
      %p155 = scmp.le.s32.totalorder 1, %s11
      %p156 = scmp.lt.s32.totalorder %s11, 4
      %p157 = pnand %p155, %p156
      %p158 = pneg %p157
      // Predicated region
      $region9: #{tpu_custom_call.1} parent=5 // pred_check
        _
      $region10: #{tpu_custom_call.1} parent=5 // pred_check_branch
        %160 = sbr.rel (%p157) target = $region12
      $region11: #{tpu_custom_call.1} parent=5 // pred_region
        %s161 = ssub.s32 %s11, 1
        // Predicated region
        $region13: #{tpu_custom_call.1} parent=11 // pred_check
          %p162 = pneg %p58
        $region14: #{tpu_custom_call.1} parent=11 // pred_check_branch
          %164 = sbr.rel (%p162) target = $region16
        $region15: #{tpu_custom_call.1} parent=11 // pred_region
          _
        $region16: #{tpu_custom_call.1} parent=11 // pred_fallthru
          _
        // Predicated region
        $region17: #{tpu_custom_call.1} parent=11 // pred_check
          %p165 = pneg %p79
        $region18: #{tpu_custom_call.1} parent=11 // pred_check_branch
          %167 = sbr.rel (%p165) target = $region20
        $region19: #{tpu_custom_call.1} parent=11 // pred_region
          _
        $region20: #{tpu_custom_call.1} parent=11 // pred_fallthru
          _
        // Predicated region
        $region21: #{tpu_custom_call.1} parent=11 // pred_check
          %p168 = pneg %p100
        $region22: #{tpu_custom_call.1} parent=11 // pred_check_branch
          %170 = sbr.rel (%p168) target = $region24
        $region23: #{tpu_custom_call.1} parent=11 // pred_region
          _
        $region24: #{tpu_custom_call.1} parent=11 // pred_fallthru
          _
        // Predicated region
        $region25: #{tpu_custom_call.1} parent=11 // pred_check
          %p171 = pneg %p121
        $region26: #{tpu_custom_call.1} parent=11 // pred_check_branch
          %173 = sbr.rel (%p171) target = $region28
        $region27: #{tpu_custom_call.1} parent=11 // pred_region
          _
        $region28: #{tpu_custom_call.1} parent=11 // pred_fallthru
          _
      $region12: #{tpu_custom_call.1} parent=5 // pred_fallthru
        _
      %p174 = scmp.lt.s32.totalorder %s11, 3
      // Predicated region
      $region29: #{tpu_custom_call.1} parent=5 // pred_check
        %p175 = pneg %p174
      $region30: #{tpu_custom_call.1} parent=5 // pred_check_branch
        %177 = sbr.rel (%p175) target = $region32
      $region31: #{tpu_custom_call.1} parent=5 // pred_region
        // Predicated region
        $region33: #{tpu_custom_call.1} parent=31 // pred_check
          %p178 = pneg %p31
        $region34: #{tpu_custom_call.1} parent=31 // pred_check_branch
          %180 = sbr.rel (%p178) target = $region36
        $region35: #{tpu_custom_call.1} parent=31 // pred_region
          %s181 = smul.u32 2, %s11
          %s182 = ssub.s32 5, %s181
          %p183 = scmp.lt.s32.totalorder %s182, 2
          %s184 = scalar_select %p183, %s182, 2
          %s185 = smul.u32 8, %s184
          %p186 = scmp.lt.s32.totalorder %s181, 4
          %s187 = scalar_select %p186, %s181, 4
          %s188 = smul.addr %s187, 8
          %s189 = scalar_lea.vmem %s0, %s188
          %s190 = smul.u32 2, %s11
          %s191 = ssub.s32 5, %s190
          %p192 = scmp.lt.s32.totalorder %s191, 2
          %s193 = scalar_select %p192, %s191, 2
          %s194 = smul.u32 8, %s193
        $region36: #{tpu_custom_call.1} parent=31 // pred_fallthru
          _
      $region32: #{tpu_custom_call.1} parent=5 // pred_fallthru
        _
      %p195 = scmp.le.s32.totalorder 1, %s11
      %p196 = scmp.lt.s32.totalorder %s11, 4
      %p197 = pnand %p195, %p196
      %p198 = pneg %p197
      // Predicated region
      $region37: #{tpu_custom_call.1} parent=5 // pred_check
        _
      $region38: #{tpu_custom_call.1} parent=5 // pred_check_branch
        %200 = sbr.rel (%p197) target = $region40
      $region39: #{tpu_custom_call.1} parent=5 // pred_region
        %s201 = ssub.s32 %s11, 1
        %s202 = smul.u32 2, %s16
        %s203 = ssub.s32 5, %s202
        %p204 = scmp.lt.s32.totalorder %s203, 2
        %s205 = scalar_select %p204, %s203, 2
        %s206 = smul.u32 8, %s205
        %p207 = scmp.lt.s32.totalorder %s202, 4
        %s208 = scalar_select %p207, %s202, 4
        %s209 = smul.addr %s208, 8
        %s210 = scalar_lea.vmem %s0, %s209
        %p211 = pneg %p37
        %p212 = pneg %p34
        %p213 = pneg %p58
        %p214 = pneg %p55
        %p215 = pneg %p79
        %p216 = pneg %p76
        %p217 = pneg %p100
        %p218 = pneg %p97
        %p219 = pneg %p121
        %p220 = pneg %p118
        %p221 = pneg %p147
        %p222 = pneg %p144
        %s223 = sand.u32 %s134, 1
        %s224 = sand.u32 %s134, 1
        %s225 = smul.addr %s224, 16
        %s226 = scalar_lea.vmem [#allocation2], %s225
        %s227 = smul.u32 2, %s16
        %s228 = ssub.s32 5, %s227
        %p229 = scmp.lt.s32.totalorder %s228, 2
        %s230 = scalar_select %p229, %s228, 2
        %s231 = smul.u32 8, %s230
        %p232 = scmp.lt.s32.totalorder %s227, 4
        %s233 = scalar_select %p232, %s227, 4
        %s234 = smul.addr %s233, 8
        %s235 = scalar_lea.vmem %s0, %s234
        %s236 = smul.u32 2, %s16
        %s237 = ssub.s32 5, %s236
        %p238 = scmp.lt.s32.totalorder %s237, 2
        %s239 = scalar_select %p238, %s237, 2
        %s240 = smul.u32 8, %s239
        %s241 = smul.u32 2, %s16
        %s242 = ssub.s32 5, %s241
        %p243 = scmp.lt.s32.totalorder %s242, 2
        %s244 = scalar_select %p243, %s242, 2
        %s245 = smul.u32 8, %s244
        %v246 = vld [vmem:[%s235] sm:$0xff]
        %v247 = vld [vmem:[%s235 + $0x8] sm:$0xff]
        %v248 = vld [vmem:[%s1] sm:$0xff]
        %v249 = vld [vmem:[%s1 + $0x8] sm:$0xff]
        %v250 = vld [vmem:[%s1 + $0x10] sm:$0xff]
        %v251 = vld [vmem:[%s1 + $0x18] sm:$0xff]
        %v252 = vld [vmem:[%s1 + $0x20] sm:$0xff]
        %v253 = vld [vmem:[%s1 + $0x28] sm:$0xff]
        %v254 = vld [vmem:[%s1 + $0x30] sm:$0xff]
        %v255 = vld [vmem:[%s1 + $0x38] sm:$0xff]
        %v256 = vld [vmem:[%s2] sm:$0x1]
        %v258 = vperm.slane %v256, 0
        %vm260 = vcmask 523264
        %v262 = vsel %vm260, %v246, 0
        %v265 = vsel %vm260, %v247, 0
        %267 = vmatpush.msra.mxu0 0.0
        %268 = vmatpush.msra.mxu0 0.0
        %269 = vmatpush.msra.mxu0 0.0
        %270 = vmatpush.msra.mxu0 0.0
        %271 = vmatpush.msra.mxu0 0.0
        %272 = vmatpush.msra.mxu0 0.0
        %273 = vmatpush.msra.mxu0 0.0
        %274 = vmatpush.msra.mxu0 0.0
        %275 = vmatpush.msra.mxu0 %v255
        %276 = vmatpush.msra.mxu0 %v254
        %277 = vmatpush.msra.mxu0 %v253
        %278 = vmatpush.msra.mxu0 %v252
        %279 = vmatpush.msra.mxu0 %v251
        %280 = vmatpush.msra.mxu0 %v250
        %281 = vmatpush.msra.mxu0 %v249
        %282 = vmatpush.msra.mxu0 %v248
        %283 = vmatmul.f32.gmra.mxu0 %v262
        %v284 = vpop.f32.mrf.mxu0
        %v285 = vadd.f32 %v258, %v284
        %286 = vmatmul.f32.gmra.mxu0 %v265
        %v287 = vpop.f32.mrf.mxu0
        %v288 = vadd.f32 %v258, %v287
        %289 = vdwg.mxu0
        %v290 = vmax.f32 %v285, 0.0
        %v291 = vmax.f32 %v288, 0.0
        %v292 = vld [vmem:[%s3] sm:$0xff]
        %v293 = vld [vmem:[%s3 + $0x8] sm:$0xff]
        %v294 = vld [vmem:[%s3 + $0x10] sm:$0xff]
        %v295 = vld [vmem:[%s3 + $0x18] sm:$0xff]
        %v296 = vld [vmem:[%s4] sm:$0x1]
        %v298 = vperm.slane %v296, 0
        %vm300 = vcmask 261120
        %v302 = vsel %vm300, %v290, 0
        %v305 = vsel %vm300, %v291, 0
        %307 = vmatpush.msra.mxu0 0.0
        %308 = vmatpush.msra.mxu0 0.0
        %309 = vmatpush.msra.mxu0 0.0
        %310 = vmatpush.msra.mxu0 0.0
        %311 = vmatpush.msra.mxu0 0.0
        %312 = vmatpush.msra.mxu0 0.0
        %313 = vmatpush.msra.mxu0 0.0
        %314 = vmatpush.msra.mxu0 0.0
        %315 = vmatpush.msra.mxu0 0.0
        %316 = vmatpush.msra.mxu0 0.0
        %317 = vmatpush.msra.mxu0 0.0
        %318 = vmatpush.msra.mxu0 0.0
        %319 = vmatpush.msra.mxu0 %v295
        %320 = vmatpush.msra.mxu0 %v294
        %321 = vmatpush.msra.mxu0 %v293
        %322 = vmatpush.msra.mxu0 %v292
        %323 = vmatmul.f32.gmra.mxu0 %v302
        %v324 = vpop.f32.mrf.mxu0
        %v325 = vadd.f32 %v298, %v324
        %326 = vmatmul.f32.gmra.mxu0 %v305
        %v327 = vpop.f32.mrf.mxu0
        %v328 = vadd.f32 %v298, %v327
        %329 = vdwg.mxu0
        %vm330 = vcmask 31744
        %331 = vst.msk [vmem:[%s226] sm:$0xff] %vm330, %v325
        %332 = vst.msk [vmem:[%s226 + $0x8] sm:$0xff] %vm330, %v328
        %s333 = sand.u32 %s134, 1
        %s334 = sand.u32 %s134, 1
        %s335 = smul.addr %s334, 16
        %s336 = scalar_lea.vmem [#allocation2], %s335
        // Predicated region
        $region41: #{tpu_custom_call.1} parent=39 // pred_check
          %p337 = pneg %p144
        $region42: #{tpu_custom_call.1} parent=39 // pred_check_branch
          %339 = sbr.rel (%p337) target = $region44
        $region43: #{tpu_custom_call.1} parent=39 // pred_region
          %s340 = smul.u32 2, %s16
          %s341 = ssub.s32 5, %s340
          %p342 = scmp.lt.s32.totalorder %s341, 2
          %s343 = scalar_select %p342, %s341, 2
          %s344 = smul.u32 8, %s343
          %p345 = scmp.ne.s32.totalorder 0, %s344
          %s346 = smul.addr %s340, 8
          %s347 = scalar_lea.vmem %s5, %s346
          // Predicated region
          $region45: #{tpu_custom_call.1} parent=43 // pred_check
            %p348 = pneg %p345
          $region46: #{tpu_custom_call.1} parent=43 // pred_check_branch
            %350 = sbr.rel (%p348) target = $region48
          $region47: #{tpu_custom_call.1} parent=43 // pred_region
            // Predicated region
            $region49: #{tpu_custom_call.1} parent=47 // pred_check
              _
            $region50: #{tpu_custom_call.1} parent=47 // pred_check_branch
              %352 = sbr.rel (0) target = $region52
            $region51: #{tpu_custom_call.1} parent=47 // pred_region
              // Predicated region
              $region71: #{tpu_custom_call.1} parent=51 // pred_check
                _
              $region72: #{tpu_custom_call.1} parent=51 // pred_check_branch
                %404 = sbr.rel (0) target = $region74
              $region73: #{tpu_custom_call.1} parent=51 // pred_region
                %s405 = sshrl.u32 %s343, 1
                // While loop
                $region75: #{tpu_custom_call.1} parent=73 // loop_pre_header
                  _
                $region76: #{tpu_custom_call.1} parent=73 // loop_header
                  %s407 = sphi 0, %s409
                  %p408 = scmp.ge.s32.totalorder %s407, %s405
                  %s412 = sphi 0, %s421
                  %s413 = sphi %s336, %s424
                  %s414 = sphi %s347, %s425
                $region77: #{tpu_custom_call.1} parent=73 // loop_header_branch
                  %411 = sbr.rel (%p408) target = $region81
                $region78: #{tpu_custom_call.1} parent=73 // loop_body
                  %v415 = vld [vmem:[%s413] sm:$0xff]
                  %416 = vst [vmem:[%s414] sm:$0xff] %v415
                  %v417 = vld [vmem:[%s413 + $0x8] sm:$0xff]
                  %418 = vst [vmem:[%s414 + $0x8] sm:$0xff] %v417
                  %s419 = sadd.s32 1, %s412
                  %p420 = scmp.ge.s32.totalorder %s419, %s405
                  %s421 = scalar_select %p420, 0, %s419
                  %s422 = smul.u32 %s421, 16
                  %s423 = smul.u32 %s421, 16
                  %s424 = scalar_lea.vmem %s336, %s422 [#allocation2]
                  %s425 = scalar_lea.vmem %s347, %s423
                $region79: #{tpu_custom_call.1} parent=73 // loop_footer
                  %s409 = sadd.s32 %s407, 1
                $region80: #{tpu_custom_call.1} parent=73 // loop_footer_branch
                  %406 = sbr.rel target = $region76
                $region81: #{tpu_custom_call.1} parent=73 // loop_exit
                  _
                %s426 = sshrl.u32 %s343, 1
                %s427 = sand.u32 %s343, 1
                %s428 = smul.u32 %s426, 2
                %s429 = smul.u32 8, %s428
                %s430 = scalar_lea.vmem %s336, %s429 [#allocation2]
                %s431 = smul.u32 8, %s428
                %s432 = scalar_lea.vmem %s347, %s431
                // While loop
                $region82: #{tpu_custom_call.1} parent=73 // loop_pre_header
                  _
                $region83: #{tpu_custom_call.1} parent=73 // loop_header
                  %s434 = sphi 0, %s436
                  %p435 = scmp.ge.s32.totalorder %s434, %s427
                  %s439 = sphi 0, %s446
                  %s440 = sphi %s430, %s449
                  %s441 = sphi %s432, %s450
                $region84: #{tpu_custom_call.1} parent=73 // loop_header_branch
                  %438 = sbr.rel (%p435) target = $region88
                $region85: #{tpu_custom_call.1} parent=73 // loop_body
                  %v442 = vld [vmem:[%s440] sm:$0xff]
                  %443 = vst [vmem:[%s441] sm:$0xff] %v442
                  %s444 = sadd.s32 1, %s439
                  %p445 = scmp.ge.s32.totalorder %s444, %s427
                  %s446 = scalar_select %p445, 0, %s444
                  %s447 = smul.u32 %s446, 8
                  %s448 = smul.u32 %s446, 8
                  %s449 = scalar_lea.vmem %s430, %s447 [#allocation2]
                  %s450 = scalar_lea.vmem %s432, %s448
                $region86: #{tpu_custom_call.1} parent=73 // loop_footer
                  %s436 = sadd.s32 %s434, 1
                $region87: #{tpu_custom_call.1} parent=73 // loop_footer_branch
                  %433 = sbr.rel target = $region83
                $region88: #{tpu_custom_call.1} parent=73 // loop_exit
                  _
              $region74: #{tpu_custom_call.1} parent=51 // pred_fallthru
                _
              // Predicated region
              $region89: #{tpu_custom_call.1} parent=51 // pred_check
                _
              $region90: #{tpu_custom_call.1} parent=51 // pred_check_branch
                %452 = sbr.rel target = $region92
              $region91: #{tpu_custom_call.1} parent=51 // pred_region
                _
              $region92: #{tpu_custom_call.1} parent=51 // pred_fallthru
                _
            $region52: #{tpu_custom_call.1} parent=47 // pred_fallthru
              _
            // Predicated region
            $region53: #{tpu_custom_call.1} parent=47 // pred_check
              _
            $region54: #{tpu_custom_call.1} parent=47 // pred_check_branch
              %354 = sbr.rel target = $region56
            $region55: #{tpu_custom_call.1} parent=47 // pred_region
              %s356 = ssub.s32 256, 1
              %s357 = sshrl.u32 %s343, 1
              // While loop
              $region57: #{tpu_custom_call.1} parent=55 // loop_pre_header
                _
              $region58: #{tpu_custom_call.1} parent=55 // loop_header
                %s359 = sphi 0, %s361
                %p360 = scmp.ge.s32.totalorder %s359, %s357
                %s364 = sphi 0, %s373
                %s365 = sphi %s336, %s376
                %s366 = sphi %s347, %s377
              $region59: #{tpu_custom_call.1} parent=55 // loop_header_branch
                %363 = sbr.rel (%p360) target = $region63
              $region60: #{tpu_custom_call.1} parent=55 // loop_body
                %v367 = vld [vmem:[%s365] sm:%s356]
                %368 = vst [vmem:[%s366] sm:%s356] %v367
                %v369 = vld [vmem:[%s365 + $0x8] sm:%s356]
                %370 = vst [vmem:[%s366 + $0x8] sm:%s356] %v369
                %s371 = sadd.s32 1, %s364
                %p372 = scmp.ge.s32.totalorder %s371, %s357
                %s373 = scalar_select %p372, 0, %s371
                %s374 = smul.u32 %s373, 16
                %s375 = smul.u32 %s373, 16
                %s376 = scalar_lea.vmem %s336, %s374 [#allocation2]
                %s377 = scalar_lea.vmem %s347, %s375
              $region61: #{tpu_custom_call.1} parent=55 // loop_footer
                %s361 = sadd.s32 %s359, 1
              $region62: #{tpu_custom_call.1} parent=55 // loop_footer_branch
                %358 = sbr.rel target = $region58
              $region63: #{tpu_custom_call.1} parent=55 // loop_exit
                _
              %s378 = sshrl.u32 %s343, 1
              %s379 = sand.u32 %s343, 1
              %s380 = smul.u32 %s378, 2
              %s381 = smul.u32 8, %s380
              %s382 = scalar_lea.vmem %s336, %s381 [#allocation2]
              %s383 = smul.u32 8, %s380
              %s384 = scalar_lea.vmem %s347, %s383
              // While loop
              $region64: #{tpu_custom_call.1} parent=55 // loop_pre_header
                _
              $region65: #{tpu_custom_call.1} parent=55 // loop_header
                %s386 = sphi 0, %s388
                %p387 = scmp.ge.s32.totalorder %s386, %s379
                %s391 = sphi 0, %s398
                %s392 = sphi %s382, %s401
                %s393 = sphi %s384, %s402
              $region66: #{tpu_custom_call.1} parent=55 // loop_header_branch
                %390 = sbr.rel (%p387) target = $region70
              $region67: #{tpu_custom_call.1} parent=55 // loop_body
                %v394 = vld [vmem:[%s392] sm:%s356]
                %395 = vst [vmem:[%s393] sm:%s356] %v394
                %s396 = sadd.s32 1, %s391
                %p397 = scmp.ge.s32.totalorder %s396, %s379
                %s398 = scalar_select %p397, 0, %s396
                %s399 = smul.u32 %s398, 8
                %s400 = smul.u32 %s398, 8
                %s401 = scalar_lea.vmem %s382, %s399 [#allocation2]
                %s402 = scalar_lea.vmem %s384, %s400
              $region68: #{tpu_custom_call.1} parent=55 // loop_footer
                %s388 = sadd.s32 %s386, 1
              $region69: #{tpu_custom_call.1} parent=55 // loop_footer_branch
                %385 = sbr.rel target = $region65
              $region70: #{tpu_custom_call.1} parent=55 // loop_exit
                _
            $region56: #{tpu_custom_call.1} parent=47 // pred_fallthru
              _
          $region48: #{tpu_custom_call.1} parent=43 // pred_fallthru
            _
          %453 = vnop
        $region44: #{tpu_custom_call.1} parent=39 // pred_fallthru
          _
      $region40: #{tpu_custom_call.1} parent=5 // pred_fallthru
        _
      %p454 = scmp.le.s32.totalorder 2, %s11
      // Predicated region
      $region93: #{tpu_custom_call.1} parent=5 // pred_check
        %p455 = pneg %p454
      $region94: #{tpu_custom_call.1} parent=5 // pred_check_branch
        %457 = sbr.rel (%p455) target = $region96
      $region95: #{tpu_custom_call.1} parent=5 // pred_region
        %s458 = ssub.s32 %s11, 2
        // Predicated region
        $region97: #{tpu_custom_call.1} parent=95 // pred_check
          %p459 = pneg %p150
        $region98: #{tpu_custom_call.1} parent=95 // pred_check_branch
          %461 = sbr.rel (%p459) target = $region100
        $region99: #{tpu_custom_call.1} parent=95 // pred_region
          %s462 = sand.u32 %s135, 1
          %s463 = sand.u32 %s135, 1
          %s464 = smul.addr %s463, 16
          %s465 = scalar_lea.vmem [#allocation2], %s464
        $region100: #{tpu_custom_call.1} parent=95 // pred_fallthru
          _
      $region96: #{tpu_custom_call.1} parent=5 // pred_fallthru
        _
    $region6: #{tpu_custom_call.1} parent=1 // loop_footer
      %s15 = sadd.s32 1, %s11
    $region7: #{tpu_custom_call.1} parent=1 // loop_footer_branch
      %10 = sbr.rel target = $region3
    $region8: #{tpu_custom_call.1} parent=1 // loop_exit
      _

</llo_original>
